<compile_context>
chip_gen: v6e
topology: v6e:2x2x1
jax: 0.10.0
libtpu: 0.0.40
codegen_flags: <defaults>
</compile_context>

<pallas_src>
import jax
import jax.numpy as jnp
from jax.experimental import pallas as pl
from jax.experimental.pallas import tpu as pltpu

_LANE = 128
_BLOCK_BYTE_BUDGET = 2 * 1024 * 1024     # conservative across v5e/v6e/v7x (64 MiB VMEM/TC)


def _copy_kernel(x_ref, o_ref):
    # Pure pass-through: BaseFeatEncoder.forward returns its input unchanged.
    o_ref[...] = x_ref[...]


def _sublane_multiple(itemsize: int) -> int:
    # f32 -> 8 rows, bf16/f16 -> 16, int8/fp8 -> 32 (packed sublane tiles).
    return max(8, 32 // max(1, itemsize))


def _pick_lane_dense_cols(total: int, itemsize: int):
    """Pick a lane-dense (multiple of 128) column count dividing `total`.

    Prefers the widest choice that still yields enough rows for several
    sublane-aligned grid blocks (pipeline overlap), then fewer rows, then any.
    """
    if total % _LANE != 0:
        return None
    candidates = (4096, 2048, 1024, 512, 256, 128)
    fits = [c for c in candidates if total % c == 0]
    if not fits:
        return None
    sub = _sublane_multiple(itemsize)
    for min_rows in (4 * sub, sub, 1):
        for c in fits:                       # widest first within each tier
            if total // c >= min_rows:
                return c
    return fits[-1]


def _pick_block_rows(rows: int, cols: int, itemsize: int) -> int:
    """Sublane-multiple block_rows near the byte budget, preferring an exact
    divisor of rows (no ragged tail -> no masked stores / short DMAs) and at
    least ~4 grid steps when the slab allows it (pipeline overlap)."""
    sub = _sublane_multiple(itemsize)
    if rows <= sub:
        return rows                          # block covers the full (short) row dim
    row_bytes = max(1, cols * itemsize)
    budget_rows = max(sub, (_BLOCK_BYTE_BUDGET // row_bytes) // sub * sub)
    overlap_rows = max(sub, (rows // 4) // sub * sub)   # keep >= ~4 steps
    target = max(sub, min(budget_rows, overlap_rows, rows))
    best = None
    for cand in range(sub, target + 1, sub):
        if rows % cand == 0:
            best = cand
    if best is not None:
        return best
    return target                            # ragged final block; Pallas masks the tail


def _vmem_limit_bytes(block_bytes: int, n_buffers: int) -> int:
    # in + out pipelines, each n_buffers deep, plus headroom; clamp so we never
    # over-reserve nor exceed v7x's 64 MiB physical VMEM per TensorCore.
    need = 2 * n_buffers * block_bytes + (2 << 20)
    return int(min(max(need, 4 << 20), 48 << 20))


def _pallas_copy_2d(x2d: jnp.ndarray) -> jnp.ndarray:
    """Streaming HBM->VMEM->HBM copy of a (rows, cols) slab."""
    rows, cols = int(x2d.shape[0]), int(x2d.shape[1])
    itemsize = x2d.dtype.itemsize
    block_rows = _pick_block_rows(rows, cols, itemsize)
    n_steps = pl.cdiv(rows, block_rows)
    block_bytes = block_rows * cols * itemsize
    cost = pl.CostEstimate(flops=0, transcendentals=0,
                           bytes_accessed=2 * rows * cols * itemsize)

    # Preferred config: CORE_PARALLEL row grid (real 2-TC split on v7x) with a
    # 3-deep input pipeline; fall back gracefully if either is rejected.
    sem_candidates = []
    core_parallel = getattr(pltpu, "CORE_PARALLEL", None)
    if n_steps > 1 and core_parallel is not None:
        sem_candidates.append((core_parallel,))
    sem_candidates.append(("parallel",))

    buffered = getattr(pl, "Buffered", None)
    depth_candidates = ([3] if (buffered is not None and n_steps > 2) else []) + [None]

    def build_and_run(sem, depth):
        in_kwargs = {}
        if depth is not None:
            in_kwargs["pipeline_mode"] = buffered(depth)
        in_spec = pl.BlockSpec((block_rows, cols), lambda i: (i, 0), **in_kwargs)
        out_spec = pl.BlockSpec((block_rows, cols), lambda i: (i, 0))
        n_buf = depth if depth is not None else 2
        fn = pl.pallas_call(
            _copy_kernel,
            out_shape=jax.ShapeDtypeStruct((rows, cols), x2d.dtype),
            grid_spec=pl.GridSpec(
                grid=(n_steps,),
                in_specs=[in_spec],
                out_specs=out_spec,
            ),
            compiler_params=pltpu.CompilerParams(
                dimension_semantics=sem,
                vmem_limit_bytes=_vmem_limit_bytes(block_bytes, n_buf),
            ),
            cost_estimate=cost,
        )
        return fn(x2d)

    last_err = None
    for sem in sem_candidates:
        for depth in depth_candidates:
            try:
                return build_and_run(sem, depth)
            except Exception as err:          # fall back to a more conservative config
                last_err = err
    raise last_err


def base_feat_encoder_forward(input_feat: jnp.ndarray,
                              materialize: bool = False) -> jnp.ndarray:
    """Pallas implementation of BaseFeatEncoder.forward (identity).

    Default: return the input directly (true identity, no HBM traffic).
    materialize=True: always return a DISTINCT buffer, produced by a
    lane-dense, VMEM-budgeted Pallas streaming copy.
    """
    if not materialize:
        return input_feat

    total = int(input_feat.size)
    if total == 0:
        return jnp.zeros(input_feat.shape, input_feat.dtype)   # distinct empty buffer

    itemsize = input_feat.dtype.itemsize
    cols = _pick_lane_dense_cols(total, itemsize)
    if cols is not None:
        # Lane-dense fast path: full-width stores, contiguous reshape is free.
        flat = input_feat.reshape(total // cols, cols)
        return _pallas_copy_2d(flat).reshape(input_feat.shape)

    # Fallback (element count not a multiple of 128): flatten trailing dims to
    # one wide axis and tile over rows -> bounded VMEM per block, wide stores,
    # and still a distinct output buffer (fixes the old aliasing fall-through).
    if input_feat.ndim >= 2:
        x2d = input_feat.reshape(input_feat.shape[0], -1)
    else:
        x2d = input_feat.reshape(1, total)
    # TODO(synk): a single non-128-divisible row wider than the VMEM cap would
    # need an additional column split; not needed for any realistic encoder input.
    return _pallas_copy_2d(x2d).reshape(input_feat.shape)


if __name__ == "__main__":
    # BaseFeatEncoder has no learnable parameters (base class); nothing to init.
    k0, k1, k2, k3 = jax.random.split(jax.random.PRNGKey(0), 4)

    x = jax.random.normal(k0, (2, 4, 16, 16), dtype=jnp.float32)

    # Fast path (recommended): pure identity, no copy, no kernel launch.
    y = base_feat_encoder_forward(x)
    assert y.shape == x.shape and y.dtype == x.dtype

    # Materialized path: lane-dense Pallas streaming-copy kernel.
    out = jax.block_until_ready(base_feat_encoder_forward(x, materialize=True))
    assert out.shape == x.shape and out.dtype == x.dtype
    assert bool(jnp.array_equal(out, x)), "identity kernel mismatch (lane-dense)"

    # Larger 128-divisible input: exercises the multi-step pipelined grid.
    x_big = jax.random.normal(k1, (4, 8, 32, 32), dtype=jnp.float32)
    out_big = jax.block_until_ready(base_feat_encoder_forward(x_big, materialize=True))
    assert bool(jnp.array_equal(out_big, x_big)), "identity kernel mismatch (multi-block)"

    # Non-128-divisible input: exercises the flattened (N, rest) fallback.
    x_odd = jax.random.normal(k2, (3, 5, 7), dtype=jnp.float32)
    out_odd = jax.block_until_ready(base_feat_encoder_forward(x_odd, materialize=True))
    assert bool(jnp.array_equal(out_odd, x_odd)), "identity kernel mismatch (fallback)"

    # 1-D non-128-divisible input: previously aliased; now a real copied buffer.
    x_vec = jax.random.normal(k3, (13,), dtype=jnp.float32)
    out_vec = jax.block_until_ready(base_feat_encoder_forward(x_vec, materialize=True))
    assert bool(jnp.array_equal(out_vec, x_vec)), "identity kernel mismatch (1-D fallback)"

    print("KERNEL_OK")
</pallas_src>

<mosaic_0001>
module attributes {stable_mosaic.version = 11 : i64} {
  func.func @_copy_kernel(%arg0: i32, %arg1: memref<8x256xf32, #tpu.memory_space<vmem>>, %arg2: memref<8x256xf32, #tpu.memory_space<vmem>>) attributes {dimension_semantics = [#tpu.dimension_semantics<parallel>], iteration_bounds = array<i64: 1>, scalar_prefetch = 0 : i64, scratch_operands = 0 : i64, tpu.core_type = #tpu.core_type<tc>, window_params = [{transform_indices = @transform_0, window_bounds = array<i64: 8, 256>}, {transform_indices = @transform_1, window_bounds = array<i64: 8, 256>}]} {
    %c0 = arith.constant 0 : index
    %c0_0 = arith.constant 0 : index
    %0 = vector.load %arg1[%c0, %c0_0] : memref<8x256xf32, #tpu.memory_space<vmem>>, vector<8x256xf32>
    %c0_1 = arith.constant 0 : index
    %c0_2 = arith.constant 0 : index
    %1 = vector.load %arg2[%c0_1, %c0_2] : memref<8x256xf32, #tpu.memory_space<vmem>>, vector<8x256xf32>
    tpu.vector_store %arg2[%c0_1, %c0_2], %0 {strides = array<i32>} : memref<8x256xf32, #tpu.memory_space<vmem>>, vector<8x256xf32>,
    return
  }
  func.func @transform_0(%arg0: i32) -> (i32, i32) {
    %c0_i32 = arith.constant 0 : i32
    %c0_i32_0 = arith.constant 0 : i32
    return %arg0, %c0_i32 : i32, i32
  }
  func.func @transform_1(%arg0: i32) -> (i32, i32) {
    %c0_i32 = arith.constant 0 : i32
    %c0_i32_0 = arith.constant 0 : i32
    return %arg0, %c0_i32 : i32, i32
  }
}

</mosaic_0001>

<llo_original>
// kernel: tpu_custom_call.1
$region0: #{tpu_custom_call.1}
  #allocation0 [shape = 'u32[]', space=smem, size = 0x4, offset = 0x4, fixed_abs, tag = 'smem constant byte address 0x4 - core index']
  #allocation1 [shape = 'u32[144,128]{1,0:T(1,128)}', space=vmem, size = 0x12000, scoped, tag = 'internal scratch']
  %s0 = inlined_call_operand.hbm [shape: f32[8,256], index: 0, kind: input, shape index: {}]
  %s1 = inlined_call_operand.hbm [shape: f32[8,256], index: 1, kind: output, shape index: {}]
  %s2 = sld [smem:[#allocation0]]
  $region18: #{tpu_custom_call.1} parent=0
    _
  %s4 = ssub.s32 1, %s2
  %s5 = scalar_select 0, %s4, %s2
  $region1: #{tpu_custom_call.1} parent=0
    #allocation2 [shape = 'u8[8192]{0}', space=vmem, size = 0x2000, scoped, tag = 'input window, operand 0, single buffered']
    #allocation3 [shape = 's32[1]{0}', space=sflag, size = 0x4, scoped, tag = 'scoped memory for tpu_custom_call.1']
    #allocation4 [shape = 's32[1]{0}', space=sflag, size = 0x4, scoped, tag = 'scoped memory for tpu_custom_call.1']
    #allocation5 [shape = 'u8[8192]{0}', space=vmem, size = 0x2000, scoped, tag = 'output window, operand 0, single buffered']
    %6 = vsyncpa [#allocation3], 0
    %7 = vsyncpa [#allocation4], 0
    // Predicated region
    $region2: #{tpu_custom_call.1} parent=1 // pred_check
      _
    $region3: #{tpu_custom_call.1} parent=1 // pred_check_branch
      %9 = sbr.rel (0) target = $region5
    $region4: #{tpu_custom_call.1} parent=1 // pred_region
      %s11 = ssub.s32 256, 256
      %12 = vsyncadd [#allocation3], %s11
      %s14 = sshll.u32 [#allocation2], 4
      %s15 = int_to_ptr.vmem [resolvable:$true] %s14
      %17 = dma.hbm_to_vmem [thread:$0]  %s0, 256, %s15, [#allocation3]
    $region5: #{tpu_custom_call.1} parent=1 // pred_fallthru
      _
    // Predicated region
    $region6: #{tpu_custom_call.1} parent=1 // pred_check
      _
    $region7: #{tpu_custom_call.1} parent=1 // pred_check_branch
      %19 = sbr.rel (0) target = $region9
    $region8: #{tpu_custom_call.1} parent=1 // pred_region
      %20 = dma.done [#allocation3], 256
    $region9: #{tpu_custom_call.1} parent=1 // pred_fallthru
      _
    %v21 = vld [vmem:[#allocation2] sm:$0xff]
    %v22 = vld [vmem:[#allocation2 + $0x8] sm:$0xff]
    %23 = vst [vmem:[#allocation5] sm:$0xff] %v21
    %24 = vst [vmem:[#allocation5 + $0x8] sm:$0xff] %v22
    // Predicated region
    $region10: #{tpu_custom_call.1} parent=1 // pred_check
      _
    $region11: #{tpu_custom_call.1} parent=1 // pred_check_branch
      %26 = sbr.rel (0) target = $region13
    $region12: #{tpu_custom_call.1} parent=1 // pred_region
      %s28 = ssub.s32 256, 256
      %29 = vsyncadd [#allocation4], %s28
      %s31 = sshll.u32 [#allocation5], 4
      %s32 = int_to_ptr.vmem [resolvable:$true] %s31
      %34 = dma.vmem_to_hbm [thread:$0]  %s32, 256, %s1, [#allocation4]
    $region13: #{tpu_custom_call.1} parent=1 // pred_fallthru
      _
    // Predicated region
    $region14: #{tpu_custom_call.1} parent=1 // pred_check
      _
    $region15: #{tpu_custom_call.1} parent=1 // pred_check_branch
      %36 = sbr.rel (0) target = $region17
    $region16: #{tpu_custom_call.1} parent=1 // pred_region
      %37 = dma.done [#allocation4], 256
    $region17: #{tpu_custom_call.1} parent=1 // pred_fallthru
      _
    %38 = vsyncpa [#allocation3], 1
    %39 = vsyncpa [#allocation4], 1

</llo_original>
